<compile_context>
chip_gen: v7x
topology: tpu7x:2x2x1
jax: 0.10.0
libtpu: 0.0.40
codegen_flags: <defaults>
</compile_context>

<pallas_src>
import jax
import jax.numpy as jnp
import numpy as np
from jax.experimental import pallas as pl
from jax.experimental.pallas import tpu as pltpu

OUT_FEATURES = 384
_SMALL_K_MAX = 8  # use the VPU broadcast-MAC path for K <= this


def _round_up(n, m):
    return ((n + m - 1) // m) * m


def _make_w_kernel(r_cut, k):
    """Build the kernel body with r_cut and (static) K baked in."""
    pi_over_rcut = float(np.pi / float(r_cut))

    def kernel(x_ref, r_ref, wt_ref, b_ref, o_ref):
        # x_ref : (TILE_E, K)   r_ref : (TILE_E, 1)
        # wt_ref: (K, 384)      b_ref : (1, 384)      o_ref : (TILE_E, 384)
        # Cutoff computed in-kernel (EUP slot; free under the DMA/vst bound).
        f_c = 0.5 * jnp.cos(pi_over_rcut * r_ref[...]) + 1.0          # (T, 1)

        if k <= _SMALL_K_MAX:
            # Depth-1..8 contraction is elementwise in disguise: VPU broadcast
            # multiply-accumulate, no MXU, no K padding.
            rbf = x_ref[:, 0:1] * wt_ref[0:1, :]                      # (T, 384)
            for kk in range(1, k):
                rbf = rbf + x_ref[:, kk : kk + 1] * wt_ref[kk : kk + 1, :]
        else:
            # Wide-K fallback: MXU dot (Mosaic handles the non-128 depth).
            rbf = jnp.dot(x_ref[...], wt_ref[...],
                          preferred_element_type=jnp.float32)

        o_ref[...] = ((rbf + b_ref[...]) * f_c).astype(o_ref.dtype)

    return kernel


def w_forward(x, r_ij, weight_t, bias, r_cut, *,
              tile_e=1024, out_dtype=jnp.float32):
    """Pallas equivalent of `w.forward` with the cutoff fused in.

    x        : (E, K)  float32   input features (K = r_ij.size(1); 1 for PaiNN)
    r_ij     : (E, 1)  float32   pair distances (f_c computed in-kernel)
    weight_t : (K, 384) float32  transposed nn.Linear weight (prepared once)
    bias     : (384,)  float32   nn.Linear bias
    r_cut    : python float      cutoff radius
    """
    E, K = x.shape
    assert weight_t.shape == (K, OUT_FEATURES)
    assert r_ij.shape == (E, 1)

    # Row tile: multiple of 8 (sublane), capped by (padded) E.
    tile_e = max(8, min(int(tile_e), _round_up(E, 8)))
    tile_e = _round_up(tile_e, 8)
    Ep = _round_up(E, tile_e)

    x32 = x.astype(jnp.float32)
    r32 = r_ij.astype(jnp.float32)
    if Ep != E:
        # Tiny tail pad so every block is full; padded rows are sliced off.
        x32 = jnp.pad(x32, ((0, Ep - E), (0, 0)))
        r32 = jnp.pad(r32, ((0, Ep - E), (0, 0)))

    wt = weight_t.astype(jnp.float32)
    b2 = bias.reshape(1, OUT_FEATURES).astype(jnp.float32)

    grid = (Ep // tile_e,)
    out = pl.pallas_call(
        _make_w_kernel(r_cut, K),
        out_shape=jax.ShapeDtypeStruct((Ep, OUT_FEATURES), out_dtype),
        grid=grid,
        in_specs=[
            pl.BlockSpec((tile_e, K), lambda i: (i, 0)),            # x tile
            pl.BlockSpec((tile_e, 1), lambda i: (i, 0)),            # r_ij tile
            pl.BlockSpec((K, OUT_FEATURES), lambda i: (0, 0)),      # W^T resident
            pl.BlockSpec((1, OUT_FEATURES), lambda i: (0, 0)),      # bias resident
        ],
        out_specs=pl.BlockSpec((tile_e, OUT_FEATURES), lambda i: (i, 0)),
        compiler_params=pltpu.CompilerParams(
            dimension_semantics=("parallel",)),
    )(x32, r32, wt, b2)

    return out[:E] if Ep != E else out


def build_module_params(in_features, seed=0):
    """Deterministic stand-in for w.__init__'s Linear (no checkpoint loading).

    Returns the weight already transposed to (K, 384) so the per-call path does
    no layout work.
    """
    key = jax.random.PRNGKey(seed)
    kw, kb = jax.random.split(key)
    bound = 1.0 / np.sqrt(in_features)          # PyTorch nn.Linear default init
    weight = jax.random.uniform(kw, (OUT_FEATURES, in_features),
                                jnp.float32, -bound, bound)
    bias = jax.random.uniform(kb, (OUT_FEATURES,), jnp.float32, -bound, bound)
    weight_t = jnp.asarray(weight.T)            # (K, 384), built once
    return weight_t, bias


def _reference(x, r_ij, weight_t, bias, r_cut):
    f_c = 0.5 * jnp.cos(jnp.pi * r_ij / r_cut) + 1.0
    return (x @ weight_t + bias) * f_c


if __name__ == "__main__":
    r_cut = 5.0
    key = jax.random.PRNGKey(0)

    # --- Test 1: tiny PaiNN-like case, single tile (E=8, K=1) ---------------
    E1 = 8
    k_r, k_x, key = jax.random.split(key, 3)
    r_ij1 = jax.random.uniform(k_r, (E1, 1), jnp.float32, 0.5, r_cut)
    x1 = jax.random.uniform(k_x, (E1, 1), jnp.float32, 0.5, r_cut)
    weight_t, bias = build_module_params(in_features=1, seed=0)

    out1 = jax.block_until_ready(w_forward(x1, r_ij1, weight_t, bias, r_cut))
    ref1 = _reference(x1, r_ij1, weight_t, bias, r_cut)
    assert out1.shape == (E1, OUT_FEATURES)
    assert jnp.allclose(out1, ref1, atol=1e-5, rtol=1e-5)

    # --- Test 2: exercise the grid + tail padding (E=200, tile_e=64) --------
    E2 = 200
    k_r2, k_x2, key = jax.random.split(key, 3)
    r_ij2 = jax.random.uniform(k_r2, (E2, 1), jnp.float32, 0.5, r_cut)
    x2 = jax.random.uniform(k_x2, (E2, 1), jnp.float32, 0.5, r_cut)

    out2 = jax.block_until_ready(
        w_forward(x2, r_ij2, weight_t, bias, r_cut, tile_e=64))
    ref2 = _reference(x2, r_ij2, weight_t, bias, r_cut)
    assert out2.shape == (E2, OUT_FEATURES)
    assert jnp.allclose(out2, ref2, atol=1e-5, rtol=1e-5)

    print("KERNEL_OK")
</pallas_src>

<mosaic_0001>
module attributes {stable_mosaic.version = 11 : i64} {
  func.func @kernel(%arg0: i32, %arg1: memref<8x1xf32, #tpu.memory_space<vmem>>, %arg2: memref<8x1xf32, #tpu.memory_space<vmem>>, %arg3: memref<1x384xf32, #tpu.memory_space<vmem>>, %arg4: memref<1x384xf32, #tpu.memory_space<vmem>>, %arg5: memref<8x384xf32, #tpu.memory_space<vmem>>) attributes {dimension_semantics = [#tpu.dimension_semantics<parallel>], iteration_bounds = array<i64: 1>, scalar_prefetch = 0 : i64, scratch_operands = 0 : i64, tpu.core_type = #tpu.core_type<tc>, window_params = [{transform_indices = @transform_0, window_bounds = array<i64: 8, 1>}, {transform_indices = @transform_1, window_bounds = array<i64: 8, 1>}, {pipeline_mode = #tpu.pipeline_mode<synchronous>, transform_indices = @transform_2, window_bounds = array<i64: 1, 384>}, {pipeline_mode = #tpu.pipeline_mode<synchronous>, transform_indices = @transform_3, window_bounds = array<i64: 1, 384>}, {transform_indices = @transform_4, window_bounds = array<i64: 8, 384>}]} {
    %c0 = arith.constant 0 : index
    %c0_0 = arith.constant 0 : index
    %0 = vector.load %arg2[%c0, %c0_0] : memref<8x1xf32, #tpu.memory_space<vmem>>, vector<8x1xf32>
    %cst = arith.constant 0.628318548 : f32
    %1 = vector.broadcast %cst : f32 to vector<8x1xf32>
    %2 = arith.mulf %1, %0 : vector<8x1xf32>
    %3 = math.cos %2 : vector<8x1xf32>
    %cst_1 = arith.constant 5.000000e-01 : f32
    %4 = vector.broadcast %cst_1 : f32 to vector<8x1xf32>
    %5 = arith.mulf %4, %3 : vector<8x1xf32>
    %cst_2 = arith.constant 1.000000e+00 : f32
    %6 = vector.broadcast %cst_2 : f32 to vector<8x1xf32>
    %7 = arith.addf %5, %6 : vector<8x1xf32>
    %c0_3 = arith.constant 0 : index
    %c0_4 = arith.constant 0 : index
    %8 = vector.load %arg1[%c0_3, %c0_4] : memref<8x1xf32, #tpu.memory_space<vmem>>, vector<8x1xf32>
    %c0_5 = arith.constant 0 : index
    %c0_6 = arith.constant 0 : index
    %9 = vector.load %arg3[%c0_5, %c0_6] : memref<1x384xf32, #tpu.memory_space<vmem>>, vector<1x384xf32>
    %10 = vector.broadcast %8 : vector<8x1xf32> to vector<8x384xf32>
    %11 = vector.broadcast %9 : vector<1x384xf32> to vector<8x384xf32>
    %12 = arith.mulf %10, %11 : vector<8x384xf32>
    %c0_7 = arith.constant 0 : index
    %c0_8 = arith.constant 0 : index
    %13 = vector.load %arg4[%c0_7, %c0_8] : memref<1x384xf32, #tpu.memory_space<vmem>>, vector<1x384xf32>
    %14 = vector.broadcast %13 : vector<1x384xf32> to vector<8x384xf32>
    %15 = arith.addf %12, %14 : vector<8x384xf32>
    %16 = vector.broadcast %7 : vector<8x1xf32> to vector<8x384xf32>
    %17 = arith.mulf %15, %16 : vector<8x384xf32>
    %c0_9 = arith.constant 0 : index
    %c0_10 = arith.constant 0 : index
    %18 = vector.load %arg5[%c0_9, %c0_10] : memref<8x384xf32, #tpu.memory_space<vmem>>, vector<8x384xf32>
    tpu.vector_store %arg5[%c0_9, %c0_10], %17 {strides = array<i32>} : memref<8x384xf32, #tpu.memory_space<vmem>>, vector<8x384xf32>,
    return
  }
  func.func @transform_0(%arg0: i32) -> (i32, i32) {
    %c0_i32 = arith.constant 0 : i32
    %c0_i32_0 = arith.constant 0 : i32
    return %arg0, %c0_i32 : i32, i32
  }
  func.func @transform_1(%arg0: i32) -> (i32, i32) {
    %c0_i32 = arith.constant 0 : i32
    %c0_i32_0 = arith.constant 0 : i32
    return %arg0, %c0_i32 : i32, i32
  }
  func.func @transform_2(%arg0: i32) -> (i32, i32) {
    %c0_i32 = arith.constant 0 : i32
    %c0_i32_0 = arith.constant 0 : i32
    %c0_i32_1 = arith.constant 0 : i32
    return %c0_i32, %c0_i32_0 : i32, i32
  }
  func.func @transform_3(%arg0: i32) -> (i32, i32) {
    %c0_i32 = arith.constant 0 : i32
    %c0_i32_0 = arith.constant 0 : i32
    %c0_i32_1 = arith.constant 0 : i32
    return %c0_i32, %c0_i32_0 : i32, i32
  }
  func.func @transform_4(%arg0: i32) -> (i32, i32) {
    %c0_i32 = arith.constant 0 : i32
    %c0_i32_0 = arith.constant 0 : i32
    return %arg0, %c0_i32 : i32, i32
  }
}

</mosaic_0001>

<llo_original>
// kernel: tpu_custom_call.1
$region0: #{tpu_custom_call.1}
  #allocation0 [shape = 'u32[]', space=smem, size = 0x4, offset = 0x4, fixed_abs, tag = 'smem constant byte address 0x4 - core index']
  #allocation1 [shape = 'u32[144,128]{1,0:T(1,128)}', space=vmem, size = 0x12000, scoped, tag = 'internal scratch']
  %s0 = inlined_call_operand.vmem [shape: f32[8,1], index: 0, kind: input, shape index: {}]
  %s1 = inlined_call_operand.vmem [shape: f32[8,1], index: 1, kind: input, shape index: {}]
  %s2 = inlined_call_operand.vmem [shape: f32[1,384], index: 2, kind: input, shape index: {}]
  %s3 = inlined_call_operand.vmem [shape: f32[1,384], index: 3, kind: input, shape index: {}]
  %s4 = inlined_call_operand.hbm [shape: f32[8,384], index: 4, kind: output, shape index: {}]
  %s5 = sld [smem:[#allocation0]]
  $region26: #{tpu_custom_call.1} parent=0
    _
  %s7 = ssub.s32 1, %s5
  %s8 = scalar_select 0, %s7, %s5
  $region1: #{tpu_custom_call.1} parent=0
    #allocation2 [shape = 'u8[12288]{0}', space=vmem, size = 0x3000, scoped, tag = 'output window, operand 0, single buffered']
    #allocation3 [shape = 's32[1]{0}', space=sflag, size = 0x4, scoped, tag = 'scoped memory for tpu_custom_call.1']
    %9 = vsyncpa [#allocation3], 0
    // Predicated region
    $region2: #{tpu_custom_call.1} parent=1 // pred_check
      _
    $region3: #{tpu_custom_call.1} parent=1 // pred_check_branch
      %11 = sbr.rel (0) target = $region5
    $region4: #{tpu_custom_call.1} parent=1 // pred_region
      _
    $region5: #{tpu_custom_call.1} parent=1 // pred_fallthru
      _
    // Predicated region
    $region6: #{tpu_custom_call.1} parent=1 // pred_check
      _
    $region7: #{tpu_custom_call.1} parent=1 // pred_check_branch
      %13 = sbr.rel (0) target = $region9
    $region8: #{tpu_custom_call.1} parent=1 // pred_region
      _
    $region9: #{tpu_custom_call.1} parent=1 // pred_fallthru
      _
    // Predicated region
    $region10: #{tpu_custom_call.1} parent=1 // pred_check
      _
    $region11: #{tpu_custom_call.1} parent=1 // pred_check_branch
      %15 = sbr.rel (0) target = $region13
    $region12: #{tpu_custom_call.1} parent=1 // pred_region
      _
    $region13: #{tpu_custom_call.1} parent=1 // pred_fallthru
      _
    // Predicated region
    $region14: #{tpu_custom_call.1} parent=1 // pred_check
      _
    $region15: #{tpu_custom_call.1} parent=1 // pred_check_branch
      %17 = sbr.rel (0) target = $region17
    $region16: #{tpu_custom_call.1} parent=1 // pred_region
      _
    $region17: #{tpu_custom_call.1} parent=1 // pred_fallthru
      _
    %v18 = vld [vmem:[%s1] sm:$0xff]
    %v19 = vmul.f32 %v18, 0.62831855
    %v20 = vand.u32 2147483647, %v19
    %vm21 = vcmp.le.f32.partialorder %v20, 0.7853982
    %vm22 = vcmp.lt.s32.totalorder %v19, 0
    %v23 = vand.u32 %v19, 2139095040
    %v24 = vshrl.u32 %v23, 23
    %v25 = vsub.s32 %v24, 127
    %v26 = vand.u32 2147483647, %v19
    %v27 = vand.u32 %v26, 8388607
    %v28 = vor.u32 %v27, 8388608
    %v29 = vsub.s32 0, %v28
    %v30 = vadd.s32 %v25, 1
    %vm31 = vcmp.gt.s32.totalorder %v30, 0
    %v32 = vsel %vm31, %v30, 0
    %v33 = vshrl.u32 %v32, 5
    %v34 = vand.u32 %v32, 31
    %v35 = vsub.s32 32, %v34
    %v36 = vshrl.u32 683565275, %v35
    %v37 = vshll.u32 683565275, %v34
    %v38 = vshrl.u32 2475754826, %v35
    %v39 = vor.u32 %v37, %v38
    %v40 = vshll.u32 2475754826, %v34
    %v41 = vshrl.u32 2131351028, %v35
    %v42 = vor.u32 %v40, %v41
    %v43 = vshll.u32 2131351028, %v34
    %v44 = vshrl.u32 2102212464, %v35
    %v45 = vor.u32 %v43, %v44
    %v46 = vshll.u32 2102212464, %v34
    %v47 = vshrl.u32 920167782, %v35
    %v48 = vor.u32 %v46, %v47
    %v49 = vshll.u32 920167782, %v34
    %v50 = vshrl.u32 1326507024, %v35
    %v51 = vor.u32 %v49, %v50
    %vm52 = vcmp.lt.s32.totalorder %v33, 1
    %vm53 = vcmp.lt.s32.totalorder %v33, 2
    %vm54 = vcmp.lt.s32.totalorder %v33, 3
    %vm55 = vcmp.lt.s32.totalorder %v33, 4
    %v56 = vsel %vm52, %v36, %v39
    %v57 = vsel %vm55, %v45, 2102212464
    %v58 = vsel %vm54, %v42, %v57
    %v59 = vsel %vm53, %v56, %v58
    %v60 = vsel %vm52, %v39, %v42
    %v61 = vsel %vm55, %v48, 920167782
    %v62 = vsel %vm54, %v45, %v61
    %v63 = vsel %vm53, %v60, %v62
    %v64 = vsel %vm52, %v42, %v45
    %v65 = vsel %vm55, %v51, 1326507024
    %v66 = vsel %vm54, %v48, %v65
    %v67 = vsel %vm53, %v64, %v66
    %v68 = vshll.u32 %v28, 8
    %v69 = vmul.u32.u64.compose %v68, %v67
    %v70 = vextract.low.u32 %v69
    %v71 = vextract.high.u32 %v69
    %v72 = vmul.u32.u64.compose %v68, %v63
    %v73 = vextract.low.u32 %v72
    %v74 = vextract.high.u32 %v72
    %v75 = vmul.u32 %v68, %v59
    %v76 = vadd.s32 %v71, %v73
    %vm77 = vc.u32 %v71, %v73
    %v78 = vadd.s32 %v74, 1
    %v79 = vsel %vm77, %v78, %v74
    %v80 = vadd.s32 %v75, %v79
    %v81 = vadd.s32 %v80, 536870912
    %v82 = vshrl.u32 %v81, 30
    %v83 = vshll.u32 %v82, 30
    %v84 = vsub.s32 %v80, %v83
    %vm85 = vcmp.lt.s32.totalorder %v84, 0
    %v86 = vsub.s32 0, %v84
    %v87 = vsel %vm85, %v86, %v84
    %v88 = vclz %v87
    %v89 = vsub.s32 %v88, 2
    %vm90 = vcmp.gt.s32.totalorder 0, %v89
    %v91 = vsel %vm90, 0, %v89
    %v92 = vsub.s32 32, %v91
    %v93 = vshll.u32 %v84, %v91
    %v94 = vshrl.u32 %v76, %v92
    %v95 = vor.u32 %v93, %v94
    %v96 = vsub.s32 4294967266, %v91
    %v97 = vadd.s32 %v96, 127
    %v98 = vshll.u32 %v97, 23
    %v99 = vor.u32 4788187, %v98
    %v100 = vand.u32 2147483647, %v99
    %v102 = vcvt.s32.f32 %v95
    %v103 = vmul.f32 %v102, %v100
    %v104 = vxor.u32 %v103, 2147483648
    %v105 = vsel %vm22, %v104, %v103
    %v106 = vsub.s32 4, %v82
    %v107 = vsel %vm22, %v106, %v82
    %v108 = vsel %vm21, %v19, %v105
    %v109 = vsel %vm21, 0, %v107
    %v110 = vcosq.f32.pop %v108
    %v111 = vsinq.f32.pop %v108
    %vm112 = vweird.f32 %v19
    %v113 = vand.u32 %v109, 3
    %vm114 = vcmp.lt.s32.totalorder %v113, 2
    %vm115 = vcmp.eq.s32.totalorder %v113, 0
    %v116 = vxor.u32 %v111, 2147483648
    %v117 = vsel %vm115, %v110, %v116
    %vm118 = vcmp.eq.s32.totalorder %v113, 2
    %v119 = vxor.u32 %v110, 2147483648
    %v120 = vsel %vm118, %v119, %v111
    %v121 = vsel %vm114, %v117, %v120
    %v122 = vsel %vm112, nan, %v121
    %v123 = vmul.f32 %v122, 0.5
    %v124 = vadd.f32 %v123, 1.0
    %v125 = vld [vmem:[%s0] sm:$0xff]
    %v126 = vld [vmem:[%s2] sm:$0x7]
    %128 = vset.pattern.permute.xlu0 0
    %129 = vperm.xlu0 %128, %v125
    %v130 = vpop.permute.xlu0 %129
    %v133 = vlaneseq
    %v134 = vshrl.u32 %v133, 7
    %v135 = vsub.s32 0, %v134
    %v136 = vrot.slane %v126, %v135
    %v137 = vlaneseq
    %v138 = vshrl.u32 %v137, 7
    %v139 = vsub.s32 1, %v138
    %v140 = vrot.slane %v126, %v139
    %v141 = vlaneseq
    %v142 = vshrl.u32 %v141, 7
    %v143 = vsub.s32 2, %v142
    %v144 = vrot.slane %v126, %v143
    %v148 = vmul.f32 %v130, %v136
    %v149 = vmul.f32 %v130, %v140
    %v150 = vmul.f32 %v130, %v144
    %v151 = vld [vmem:[%s3] sm:$0x7]
    %v153 = vlaneseq
    %v154 = vshrl.u32 %v153, 7
    %v155 = vsub.s32 0, %v154
    %v156 = vrot.slane %v151, %v155
    %v157 = vlaneseq
    %v158 = vshrl.u32 %v157, 7
    %v159 = vsub.s32 1, %v158
    %v160 = vrot.slane %v151, %v159
    %v161 = vlaneseq
    %v162 = vshrl.u32 %v161, 7
    %v163 = vsub.s32 2, %v162
    %v164 = vrot.slane %v151, %v163
    %v168 = vadd.f32 %v148, %v156
    %v169 = vadd.f32 %v149, %v160
    %v170 = vadd.f32 %v150, %v164
    %172 = vset.pattern.permute.xlu0 0
    %173 = vperm.xlu0 %172, %v124
    %v174 = vpop.permute.xlu0 %173
    %v176 = vmul.f32 %v168, %v174
    %v177 = vmul.f32 %v169, %v174
    %v178 = vmul.f32 %v170, %v174
    %179 = vst [vmem:[#allocation2] sm:$0xff] %v176
    %180 = vst [vmem:[#allocation2 + $0x8] sm:$0xff] %v177
    %181 = vst [vmem:[#allocation2 + $0x10] sm:$0xff] %v178
    // Predicated region
    $region18: #{tpu_custom_call.1} parent=1 // pred_check
      _
    $region19: #{tpu_custom_call.1} parent=1 // pred_check_branch
      %183 = sbr.rel (0) target = $region21
    $region20: #{tpu_custom_call.1} parent=1 // pred_region
      %s185 = ssub.s32 384, 384
      %186 = vsyncadd [#allocation3], %s185
      %s188 = sshll.u32 [#allocation2], 4
      %s189 = int_to_ptr.vmem [resolvable:$true] %s188
      %191 = dma.vmem_to_hbm [thread:$0]  %s189, 384, %s4, [#allocation3]
    $region21: #{tpu_custom_call.1} parent=1 // pred_fallthru
      _
    // Predicated region
    $region22: #{tpu_custom_call.1} parent=1 // pred_check
      _
    $region23: #{tpu_custom_call.1} parent=1 // pred_check_branch
      %193 = sbr.rel (0) target = $region25
    $region24: #{tpu_custom_call.1} parent=1 // pred_region
      %194 = dma.done [#allocation3], 384
    $region25: #{tpu_custom_call.1} parent=1 // pred_fallthru
      _
    %195 = vsyncpa [#allocation3], 1

</llo_original>
